<compile_context>
chip_gen: v7x
topology: tpu7x:2x2x1
jax: 0.10.0
libtpu: 0.0.40
codegen_flags: <defaults>
</compile_context>

<pallas_src>
import math
import functools

import jax
import jax.numpy as jnp
from jax.experimental import pallas as pl
from jax.experimental.pallas import tpu as pltpu


def _round_up(n: int, m: int) -> int:
    return ((n + m - 1) // m) * m


def self_attn_kernel(x_ref, wqkv_ref, wp_ref, bp_ref, o_ref, *, n_heads, dh):
    """Per-tile fused: QKV projection + head-axis attention + output projection."""
    mm_dtype = wqkv_ref.dtype
    x = x_ref[...].astype(mm_dtype)                                    # (TM, model_dim)

    # Single fused QKV projection on the MXU.  Column layout (prepared in the wrapper):
    #   [ q (head-major, 1/scale folded) | k (head-major) | v (head-major) ], each `inner` wide.
    qkv = jnp.dot(x, wqkv_ref[...], preferred_element_type=jnp.float32)  # (TM, 3*inner) f32

    inner = n_heads * dh
    q = qkv[:, 0 * inner:1 * inner]
    k = qkv[:, 1 * inner:2 * inner]
    v = qkv[:, 2 * inner:3 * inner]

    tm = x.shape[0]
    model_dim = wp_ref.shape[1]

    # Attention is over the HEAD axis (per token), exactly as in the reference module.
    # n_heads is tiny -> fully unrolled; no concatenation (lane packing) anywhere, and each
    # head's context is projected + accumulated immediately, keeping the live set small.
    acc = jnp.zeros((tm, model_dim), jnp.float32)
    for i in range(n_heads):
        qi = q[:, i * dh:(i + 1) * dh]                                 # (TM, dh), scale pre-folded

        # Scores of head i against all heads j (two-pass stable softmax over H values).
        s = [jnp.sum(qi * k[:, j * dh:(j + 1) * dh], axis=-1, keepdims=True)
             for j in range(n_heads)]                                  # H x (TM, 1) f32
        m = s[0]
        for j in range(1, n_heads):
            m = jnp.maximum(m, s[j])
        e = [jnp.exp(sj - m) for sj in s]
        denom = e[0]
        for j in range(1, n_heads):
            denom = denom + e[j]
        inv_denom = pl.reciprocal(denom, approx=True)                  # EUP slot, ~free

        ctx_i = (e[0] * inv_denom) * v[:, 0:dh]                        # (TM, dh) f32
        for j in range(1, n_heads):
            ctx_i = ctx_i + (e[j] * inv_denom) * v[:, j * dh:(j + 1) * dh]

        # Per-head output-projection accumulation on the MXU (no ctx concat).
        acc = acc + jnp.dot(ctx_i.astype(mm_dtype),
                            wp_ref[i * dh:(i + 1) * dh, :],
                            preferred_element_type=jnp.float32)

    # TODO(synk): for model_dim < 128 the output stores are lane-masked; a wrapper-side fold of
    # tokens into the lane axis would make them dense (non-issue once model_dim >= 128).
    o_ref[...] = (acc + bp_ref[...]).astype(o_ref.dtype)


def prepare_params(W_qkv, W_p, b_p, *, n_heads, scale='identity',
                   matmul_dtype=jnp.bfloat16):
    """One-time weight preparation (hoisted out of the per-forward path).

    W_qkv: (3*inner_dim, model_dim) torch Linear layout (no bias)
    W_p  : (model_dim, inner_dim);  b_p: (model_dim,)
    Returns (Wqkv_fused, Wp_t, bias):
      Wqkv_fused: (model_dim, 3*inner), columns = [q | k | v], each head-major, q pre-scaled
      Wp_t      : (inner, model_dim)
      bias      : (1, model_dim) float32
    """
    three_inner, model_dim = W_qkv.shape
    inner = three_inner // 3
    dh = inner // n_heads
    scale_val = {'identity': 1.0, 'inv_sqrt': math.sqrt(dh)}.get(scale, 1.0)

    # Reproduce the module's split semantics: qkv -> (.., H, 3*dh) -> split along last dim.
    W = W_qkv.T.reshape(model_dim, n_heads, 3 * dh)
    Wq = W[:, :, 0 * dh:1 * dh].reshape(model_dim, inner) * (1.0 / scale_val)  # fold 1/scale
    Wk = W[:, :, 1 * dh:2 * dh].reshape(model_dim, inner)
    Wv = W[:, :, 2 * dh:3 * dh].reshape(model_dim, inner)
    Wqkv = jnp.concatenate([Wq, Wk, Wv], axis=1).astype(matmul_dtype)  # (model_dim, 3*inner)
    Wp = W_p.T.astype(matmul_dtype)                                    # (inner, model_dim)
    bp = b_p.reshape(1, model_dim).astype(jnp.float32)
    return Wqkv, Wp, bp


def self_attention(x, params, *, n_heads, tm=256):
    """x: (B, N, model_dim); params: output of prepare_params."""
    Wqkv, Wp, bp = params
    B, N, model_dim = x.shape
    inner = Wqkv.shape[1] // 3
    dh = inner // n_heads

    M = B * N
    tm = _round_up(tm, 8)
    tm_eff = min(tm, _round_up(M, 8))        # don't over-tile tiny inputs
    M_pad = _round_up(M, tm_eff)

    xf = x.reshape(M, model_dim)
    if M_pad != M:
        xf = jnp.pad(xf, ((0, M_pad - M), (0, 0)))   # zero rows are harmless (softmax of zeros)

    kernel = functools.partial(self_attn_kernel, n_heads=n_heads, dh=dh)

    out = pl.pallas_call(
        kernel,
        out_shape=jax.ShapeDtypeStruct((M_pad, model_dim), x.dtype),
        grid=(M_pad // tm_eff,),
        in_specs=[
            pl.BlockSpec((tm_eff, model_dim), lambda i: (i, 0)),       # x tile
            pl.BlockSpec((model_dim, 3 * inner), lambda i: (0, 0)),    # fused Wqkv (resident)
            pl.BlockSpec((inner, model_dim), lambda i: (0, 0)),        # Wp (resident)
            pl.BlockSpec((1, model_dim), lambda i: (0, 0)),            # bias
        ],
        out_specs=pl.BlockSpec((tm_eff, model_dim), lambda i: (i, 0)),
        compiler_params=pltpu.CompilerParams(
            dimension_semantics=("parallel",),       # shards grid steps across TCs (v7x)
            vmem_limit_bytes=48 * 1024 * 1024,       # above default scoped limits, < v7x 64 MiB
        ),
    )(xf, Wqkv, Wp, bp)

    if M_pad != M:
        out = out[:M]
    return out.reshape(B, N, model_dim)


def ref_forward(x, W_qkv, W_p, b_p, *, n_heads, scale='identity'):
    """Pure-JAX mirror of the PyTorch forward (eval mode, mask=None)."""
    B, N, model_dim = x.shape
    inner_dim = W_qkv.shape[0] // 3
    dh = inner_dim // n_heads
    scale_val = {'identity': 1.0, 'inv_sqrt': math.sqrt(dh)}.get(scale, 1.0)

    qkv = x @ W_qkv.T                                                  # (B, N, 3*inner)
    qkv = qkv.reshape(B, N, n_heads, 3 * dh)
    q, k, v = qkv[..., :dh], qkv[..., dh:2 * dh], qkv[..., 2 * dh:]
    scores = jnp.einsum('bnhd,bngd->bnhg', q, k) / scale_val           # (B, N, H, H)
    scores = jax.nn.softmax(scores, axis=-1)
    ctx = jnp.einsum('bnhg,bngd->bnhd', scores, v)                     # (B, N, H, dh)
    ctx = ctx.reshape(B, N, inner_dim)
    return ctx @ W_p.T + b_p


if __name__ == "__main__":
    B, N = 2, 8
    MODEL_DIM, INNER_DIM, N_HEADS = 32, 32, 4
    SCALE = 'inv_sqrt'
    # TODO(synk): mask path and training-time dropout-on-scores not exercised (mask=None, eval).

    key = jax.random.PRNGKey(0)
    kx, k1, k2, k3 = jax.random.split(key, 4)
    x = jax.random.normal(kx, (B, N, MODEL_DIM), dtype=jnp.float32)
    W_qkv = jax.random.normal(k1, (3 * INNER_DIM, MODEL_DIM), jnp.float32) / math.sqrt(MODEL_DIM)
    W_p = jax.random.normal(k2, (MODEL_DIM, INNER_DIM), jnp.float32) / math.sqrt(INNER_DIM)
    b_p = 0.1 * jax.random.normal(k3, (MODEL_DIM,), jnp.float32)

    ref = ref_forward(x, W_qkv, W_p, b_p, n_heads=N_HEADS, scale=SCALE)

    # f32 matmul path: tight structural check against the pure-JAX reference.
    params_f32 = prepare_params(W_qkv, W_p, b_p, n_heads=N_HEADS, scale=SCALE,
                                matmul_dtype=jnp.float32)
    out_f32 = jax.block_until_ready(self_attention(x, params_f32, n_heads=N_HEADS))
    assert out_f32.shape == (B, N, MODEL_DIM)
    assert jnp.allclose(out_f32, ref, atol=2e-2, rtol=2e-2), "f32 path mismatch vs reference"

    # bf16 matmul path (default, MXU-native): loose tolerance per bf16 rounding.
    params_bf16 = prepare_params(W_qkv, W_p, b_p, n_heads=N_HEADS, scale=SCALE,
                                 matmul_dtype=jnp.bfloat16)
    out_bf16 = jax.block_until_ready(self_attention(x, params_bf16, n_heads=N_HEADS))
    assert out_bf16.shape == (B, N, MODEL_DIM)
    assert jnp.allclose(out_bf16, ref, atol=1e-1, rtol=1e-1), "bf16 path mismatch vs reference"

    print("KERNEL_OK")
</pallas_src>

<mosaic_0001>
module attributes {stable_mosaic.version = 11 : i64} {
  func.func @self_attn_kernel(%arg0: i32, %arg1: memref<16x32xf32, #tpu.memory_space<vmem>>, %arg2: memref<32x96xf32, #tpu.memory_space<vmem>>, %arg3: memref<32x32xf32, #tpu.memory_space<vmem>>, %arg4: memref<1x32xf32, #tpu.memory_space<vmem>>, %arg5: memref<16x32xf32, #tpu.memory_space<vmem>>) attributes {dimension_semantics = [#tpu.dimension_semantics<parallel>], iteration_bounds = array<i64: 1>, scalar_prefetch = 0 : i64, scratch_operands = 0 : i64, tpu.core_type = #tpu.core_type<tc>, window_params = [{transform_indices = @transform_0, window_bounds = array<i64: 16, 32>}, {pipeline_mode = #tpu.pipeline_mode<synchronous>, transform_indices = @transform_1, window_bounds = array<i64: 32, 96>}, {pipeline_mode = #tpu.pipeline_mode<synchronous>, transform_indices = @transform_2, window_bounds = array<i64: 32, 32>}, {pipeline_mode = #tpu.pipeline_mode<synchronous>, transform_indices = @transform_3, window_bounds = array<i64: 1, 32>}, {transform_indices = @transform_4, window_bounds = array<i64: 16, 32>}]} {
    %c0 = arith.constant 0 : index
    %c0_0 = arith.constant 0 : index
    %0 = vector.load %arg1[%c0, %c0_0] : memref<16x32xf32, #tpu.memory_space<vmem>>, vector<16x32xf32>
    %c0_1 = arith.constant 0 : index
    %c0_2 = arith.constant 0 : index
    %1 = vector.load %arg2[%c0_1, %c0_2] : memref<32x96xf32, #tpu.memory_space<vmem>>, vector<32x96xf32>
    %cst = arith.constant dense<0.000000e+00> : vector<16x96xf32>
    %2 = tpu.matmul %0, %1, %cst {dimension_numbers = #tpu.dot_dimension_numbers<[1], [0], [0], [1], [0, 0, 1, 1], [], []>} : vector<16x32xf32>, vector<32x96xf32>, vector<16x96xf32> -> vector<16x96xf32>
    %3 = vector.extract_strided_slice %2 {offsets = [0, 0], sizes = [16, 32], strides = [1, 1]} : vector<16x96xf32> to vector<16x32xf32>
    %4 = vector.extract_strided_slice %2 {offsets = [0, 32], sizes = [16, 32], strides = [1, 1]} : vector<16x96xf32> to vector<16x32xf32>
    %5 = vector.extract_strided_slice %2 {offsets = [0, 64], sizes = [16, 32], strides = [1, 1]} : vector<16x96xf32> to vector<16x32xf32>
    %cst_3 = arith.constant 0.000000e+00 : f32
    %6 = vector.broadcast %cst_3 : f32 to vector<16x32xf32>
    %7 = vector.extract_strided_slice %3 {offsets = [0, 0], sizes = [16, 8], strides = [1, 1]} : vector<16x32xf32> to vector<16x8xf32>
    %8 = vector.extract_strided_slice %4 {offsets = [0, 0], sizes = [16, 8], strides = [1, 1]} : vector<16x32xf32> to vector<16x8xf32>
    %9 = arith.mulf %7, %8 : vector<16x8xf32>
    %cst_4 = arith.constant dense<0.000000e+00> : vector<16xf32>
    %10 = vector.multi_reduction <add>, %9, %cst_4 [1] : vector<16x8xf32> to vector<16xf32>
    %11 = vector.shape_cast %10 : vector<16xf32> to vector<16x1xf32>
    %12 = vector.extract_strided_slice %4 {offsets = [0, 8], sizes = [16, 8], strides = [1, 1]} : vector<16x32xf32> to vector<16x8xf32>
    %13 = arith.mulf %7, %12 : vector<16x8xf32>
    %cst_5 = arith.constant dense<0.000000e+00> : vector<16xf32>
    %14 = vector.multi_reduction <add>, %13, %cst_5 [1] : vector<16x8xf32> to vector<16xf32>
    %15 = vector.shape_cast %14 : vector<16xf32> to vector<16x1xf32>
    %16 = vector.extract_strided_slice %4 {offsets = [0, 16], sizes = [16, 8], strides = [1, 1]} : vector<16x32xf32> to vector<16x8xf32>
    %17 = arith.mulf %7, %16 : vector<16x8xf32>
    %cst_6 = arith.constant dense<0.000000e+00> : vector<16xf32>
    %18 = vector.multi_reduction <add>, %17, %cst_6 [1] : vector<16x8xf32> to vector<16xf32>
    %19 = vector.shape_cast %18 : vector<16xf32> to vector<16x1xf32>
    %20 = vector.extract_strided_slice %4 {offsets = [0, 24], sizes = [16, 8], strides = [1, 1]} : vector<16x32xf32> to vector<16x8xf32>
    %21 = arith.mulf %7, %20 : vector<16x8xf32>
    %cst_7 = arith.constant dense<0.000000e+00> : vector<16xf32>
    %22 = vector.multi_reduction <add>, %21, %cst_7 [1] : vector<16x8xf32> to vector<16xf32>
    %23 = vector.shape_cast %22 : vector<16xf32> to vector<16x1xf32>
    %24 = arith.maximumf %11, %15 : vector<16x1xf32>
    %25 = arith.maximumf %24, %19 : vector<16x1xf32>
    %26 = arith.maximumf %25, %23 : vector<16x1xf32>
    %27 = arith.subf %11, %26 : vector<16x1xf32>
    %28 = math.exp %27 : vector<16x1xf32>
    %29 = arith.subf %15, %26 : vector<16x1xf32>
    %30 = math.exp %29 : vector<16x1xf32>
    %31 = arith.subf %19, %26 : vector<16x1xf32>
    %32 = math.exp %31 : vector<16x1xf32>
    %33 = arith.subf %23, %26 : vector<16x1xf32>
    %34 = math.exp %33 : vector<16x1xf32>
    %35 = arith.addf %28, %30 : vector<16x1xf32>
    %36 = arith.addf %35, %32 : vector<16x1xf32>
    %37 = arith.addf %36, %34 : vector<16x1xf32>
    %38 = tpu.reciprocal %37 {approx = true} : vector<16x1xf32> -> vector<16x1xf32>
    %39 = arith.mulf %28, %38 : vector<16x1xf32>
    %40 = vector.extract_strided_slice %5 {offsets = [0, 0], sizes = [16, 8], strides = [1, 1]} : vector<16x32xf32> to vector<16x8xf32>
    %41 = vector.broadcast %39 : vector<16x1xf32> to vector<16x8xf32>
    %42 = arith.mulf %41, %40 : vector<16x8xf32>
    %43 = arith.mulf %30, %38 : vector<16x1xf32>
    %44 = vector.extract_strided_slice %5 {offsets = [0, 8], sizes = [16, 8], strides = [1, 1]} : vector<16x32xf32> to vector<16x8xf32>
    %45 = vector.broadcast %43 : vector<16x1xf32> to vector<16x8xf32>
    %46 = arith.mulf %45, %44 : vector<16x8xf32>
    %47 = arith.addf %42, %46 : vector<16x8xf32>
    %48 = arith.mulf %32, %38 : vector<16x1xf32>
    %49 = vector.extract_strided_slice %5 {offsets = [0, 16], sizes = [16, 8], strides = [1, 1]} : vector<16x32xf32> to vector<16x8xf32>
    %50 = vector.broadcast %48 : vector<16x1xf32> to vector<16x8xf32>
    %51 = arith.mulf %50, %49 : vector<16x8xf32>
    %52 = arith.addf %47, %51 : vector<16x8xf32>
    %53 = arith.mulf %34, %38 : vector<16x1xf32>
    %54 = vector.extract_strided_slice %5 {offsets = [0, 24], sizes = [16, 8], strides = [1, 1]} : vector<16x32xf32> to vector<16x8xf32>
    %55 = vector.broadcast %53 : vector<16x1xf32> to vector<16x8xf32>
    %56 = arith.mulf %55, %54 : vector<16x8xf32>
    %57 = arith.addf %52, %56 : vector<16x8xf32>
    %c0_8 = arith.constant 0 : index
    %c0_9 = arith.constant 0 : index
    %58 = vector.load %arg3[%c0_8, %c0_9] : memref<32x32xf32, #tpu.memory_space<vmem>>, vector<8x32xf32>
    %cst_10 = arith.constant dense<0.000000e+00> : vector<16x32xf32>
    %59 = tpu.matmul %57, %58, %cst_10 {dimension_numbers = #tpu.dot_dimension_numbers<[1], [0], [0], [1], [0, 0, 1, 1], [], []>} : vector<16x8xf32>, vector<8x32xf32>, vector<16x32xf32> -> vector<16x32xf32>
    %60 = arith.addf %6, %59 : vector<16x32xf32>
    %61 = vector.extract_strided_slice %3 {offsets = [0, 8], sizes = [16, 8], strides = [1, 1]} : vector<16x32xf32> to vector<16x8xf32>
    %62 = vector.extract_strided_slice %4 {offsets = [0, 0], sizes = [16, 8], strides = [1, 1]} : vector<16x32xf32> to vector<16x8xf32>
    %63 = arith.mulf %61, %62 : vector<16x8xf32>
    %cst_11 = arith.constant dense<0.000000e+00> : vector<16xf32>
    %64 = vector.multi_reduction <add>, %63, %cst_11 [1] : vector<16x8xf32> to vector<16xf32>
    %65 = vector.shape_cast %64 : vector<16xf32> to vector<16x1xf32>
    %66 = vector.extract_strided_slice %4 {offsets = [0, 8], sizes = [16, 8], strides = [1, 1]} : vector<16x32xf32> to vector<16x8xf32>
    %67 = arith.mulf %61, %66 : vector<16x8xf32>
    %cst_12 = arith.constant dense<0.000000e+00> : vector<16xf32>
    %68 = vector.multi_reduction <add>, %67, %cst_12 [1] : vector<16x8xf32> to vector<16xf32>
    %69 = vector.shape_cast %68 : vector<16xf32> to vector<16x1xf32>
    %70 = vector.extract_strided_slice %4 {offsets = [0, 16], sizes = [16, 8], strides = [1, 1]} : vector<16x32xf32> to vector<16x8xf32>
    %71 = arith.mulf %61, %70 : vector<16x8xf32>
    %cst_13 = arith.constant dense<0.000000e+00> : vector<16xf32>
    %72 = vector.multi_reduction <add>, %71, %cst_13 [1] : vector<16x8xf32> to vector<16xf32>
    %73 = vector.shape_cast %72 : vector<16xf32> to vector<16x1xf32>
    %74 = vector.extract_strided_slice %4 {offsets = [0, 24], sizes = [16, 8], strides = [1, 1]} : vector<16x32xf32> to vector<16x8xf32>
    %75 = arith.mulf %61, %74 : vector<16x8xf32>
    %cst_14 = arith.constant dense<0.000000e+00> : vector<16xf32>
    %76 = vector.multi_reduction <add>, %75, %cst_14 [1] : vector<16x8xf32> to vector<16xf32>
    %77 = vector.shape_cast %76 : vector<16xf32> to vector<16x1xf32>
    %78 = arith.maximumf %65, %69 : vector<16x1xf32>
    %79 = arith.maximumf %78, %73 : vector<16x1xf32>
    %80 = arith.maximumf %79, %77 : vector<16x1xf32>
    %81 = arith.subf %65, %80 : vector<16x1xf32>
    %82 = math.exp %81 : vector<16x1xf32>
    %83 = arith.subf %69, %80 : vector<16x1xf32>
    %84 = math.exp %83 : vector<16x1xf32>
    %85 = arith.subf %73, %80 : vector<16x1xf32>
    %86 = math.exp %85 : vector<16x1xf32>
    %87 = arith.subf %77, %80 : vector<16x1xf32>
    %88 = math.exp %87 : vector<16x1xf32>
    %89 = arith.addf %82, %84 : vector<16x1xf32>
    %90 = arith.addf %89, %86 : vector<16x1xf32>
    %91 = arith.addf %90, %88 : vector<16x1xf32>
    %92 = tpu.reciprocal %91 {approx = true} : vector<16x1xf32> -> vector<16x1xf32>
    %93 = arith.mulf %82, %92 : vector<16x1xf32>
    %94 = vector.extract_strided_slice %5 {offsets = [0, 0], sizes = [16, 8], strides = [1, 1]} : vector<16x32xf32> to vector<16x8xf32>
    %95 = vector.broadcast %93 : vector<16x1xf32> to vector<16x8xf32>
    %96 = arith.mulf %95, %94 : vector<16x8xf32>
    %97 = arith.mulf %84, %92 : vector<16x1xf32>
    %98 = vector.extract_strided_slice %5 {offsets = [0, 8], sizes = [16, 8], strides = [1, 1]} : vector<16x32xf32> to vector<16x8xf32>
    %99 = vector.broadcast %97 : vector<16x1xf32> to vector<16x8xf32>
    %100 = arith.mulf %99, %98 : vector<16x8xf32>
    %101 = arith.addf %96, %100 : vector<16x8xf32>
    %102 = arith.mulf %86, %92 : vector<16x1xf32>
    %103 = vector.extract_strided_slice %5 {offsets = [0, 16], sizes = [16, 8], strides = [1, 1]} : vector<16x32xf32> to vector<16x8xf32>
    %104 = vector.broadcast %102 : vector<16x1xf32> to vector<16x8xf32>
    %105 = arith.mulf %104, %103 : vector<16x8xf32>
    %106 = arith.addf %101, %105 : vector<16x8xf32>
    %107 = arith.mulf %88, %92 : vector<16x1xf32>
    %108 = vector.extract_strided_slice %5 {offsets = [0, 24], sizes = [16, 8], strides = [1, 1]} : vector<16x32xf32> to vector<16x8xf32>
    %109 = vector.broadcast %107 : vector<16x1xf32> to vector<16x8xf32>
    %110 = arith.mulf %109, %108 : vector<16x8xf32>
    %111 = arith.addf %106, %110 : vector<16x8xf32>
    %c8 = arith.constant 8 : index
    %c0_15 = arith.constant 0 : index
    %112 = vector.load %arg3[%c8, %c0_15] : memref<32x32xf32, #tpu.memory_space<vmem>>, vector<8x32xf32>
    %cst_16 = arith.constant dense<0.000000e+00> : vector<16x32xf32>
    %113 = tpu.matmul %111, %112, %cst_16 {dimension_numbers = #tpu.dot_dimension_numbers<[1], [0], [0], [1], [0, 0, 1, 1], [], []>} : vector<16x8xf32>, vector<8x32xf32>, vector<16x32xf32> -> vector<16x32xf32>
    %114 = arith.addf %60, %113 : vector<16x32xf32>
    %115 = vector.extract_strided_slice %3 {offsets = [0, 16], sizes = [16, 8], strides = [1, 1]} : vector<16x32xf32> to vector<16x8xf32>
    %116 = vector.extract_strided_slice %4 {offsets = [0, 0], sizes = [16, 8], strides = [1, 1]} : vector<16x32xf32> to vector<16x8xf32>
    %117 = arith.mulf %115, %116 : vector<16x8xf32>
    %cst_17 = arith.constant dense<0.000000e+00> : vector<16xf32>
    %118 = vector.multi_reduction <add>, %117, %cst_17 [1] : vector<16x8xf32> to vector<16xf32>
    %119 = vector.shape_cast %118 : vector<16xf32> to vector<16x1xf32>
    %120 = vector.extract_strided_slice %4 {offsets = [0, 8], sizes = [16, 8], strides = [1, 1]} : vector<16x32xf32> to vector<16x8xf32>
    %121 = arith.mulf %115, %120 : vector<16x8xf32>
    %cst_18 = arith.constant dense<0.000000e+00> : vector<16xf32>
    %122 = vector.multi_reduction <add>, %121, %cst_18 [1] : vector<16x8xf32> to vector<16xf32>
    %123 = vector.shape_cast %122 : vector<16xf32> to vector<16x1xf32>
    %124 = vector.extract_strided_slice %4 {offsets = [0, 16], sizes = [16, 8], strides = [1, 1]} : vector<16x32xf32> to vector<16x8xf32>
    %125 = arith.mulf %115, %124 : vector<16x8xf32>
    %cst_19 = arith.constant dense<0.000000e+00> : vector<16xf32>
    %126 = vector.multi_reduction <add>, %125, %cst_19 [1] : vector<16x8xf32> to vector<16xf32>
    %127 = vector.shape_cast %126 : vector<16xf32> to vector<16x1xf32>
    %128 = vector.extract_strided_slice %4 {offsets = [0, 24], sizes = [16, 8], strides = [1, 1]} : vector<16x32xf32> to vector<16x8xf32>
    %129 = arith.mulf %115, %128 : vector<16x8xf32>
    %cst_20 = arith.constant dense<0.000000e+00> : vector<16xf32>
    %130 = vector.multi_reduction <add>, %129, %cst_20 [1] : vector<16x8xf32> to vector<16xf32>
    %131 = vector.shape_cast %130 : vector<16xf32> to vector<16x1xf32>
    %132 = arith.maximumf %119, %123 : vector<16x1xf32>
    %133 = arith.maximumf %132, %127 : vector<16x1xf32>
    %134 = arith.maximumf %133, %131 : vector<16x1xf32>
    %135 = arith.subf %119, %134 : vector<16x1xf32>
    %136 = math.exp %135 : vector<16x1xf32>
    %137 = arith.subf %123, %134 : vector<16x1xf32>
    %138 = math.exp %137 : vector<16x1xf32>
    %139 = arith.subf %127, %134 : vector<16x1xf32>
    %140 = math.exp %139 : vector<16x1xf32>
    %141 = arith.subf %131, %134 : vector<16x1xf32>
    %142 = math.exp %141 : vector<16x1xf32>
    %143 = arith.addf %136, %138 : vector<16x1xf32>
    %144 = arith.addf %143, %140 : vector<16x1xf32>
    %145 = arith.addf %144, %142 : vector<16x1xf32>
    %146 = tpu.reciprocal %145 {approx = true} : vector<16x1xf32> -> vector<16x1xf32>
    %147 = arith.mulf %136, %146 : vector<16x1xf32>
    %148 = vector.extract_strided_slice %5 {offsets = [0, 0], sizes = [16, 8], strides = [1, 1]} : vector<16x32xf32> to vector<16x8xf32>
    %149 = vector.broadcast %147 : vector<16x1xf32> to vector<16x8xf32>
    %150 = arith.mulf %149, %148 : vector<16x8xf32>
    %151 = arith.mulf %138, %146 : vector<16x1xf32>
    %152 = vector.extract_strided_slice %5 {offsets = [0, 8], sizes = [16, 8], strides = [1, 1]} : vector<16x32xf32> to vector<16x8xf32>
    %153 = vector.broadcast %151 : vector<16x1xf32> to vector<16x8xf32>
    %154 = arith.mulf %153, %152 : vector<16x8xf32>
    %155 = arith.addf %150, %154 : vector<16x8xf32>
    %156 = arith.mulf %140, %146 : vector<16x1xf32>
    %157 = vector.extract_strided_slice %5 {offsets = [0, 16], sizes = [16, 8], strides = [1, 1]} : vector<16x32xf32> to vector<16x8xf32>
    %158 = vector.broadcast %156 : vector<16x1xf32> to vector<16x8xf32>
    %159 = arith.mulf %158, %157 : vector<16x8xf32>
    %160 = arith.addf %155, %159 : vector<16x8xf32>
    %161 = arith.mulf %142, %146 : vector<16x1xf32>
    %162 = vector.extract_strided_slice %5 {offsets = [0, 24], sizes = [16, 8], strides = [1, 1]} : vector<16x32xf32> to vector<16x8xf32>
    %163 = vector.broadcast %161 : vector<16x1xf32> to vector<16x8xf32>
    %164 = arith.mulf %163, %162 : vector<16x8xf32>
    %165 = arith.addf %160, %164 : vector<16x8xf32>
    %c16 = arith.constant 16 : index
    %c0_21 = arith.constant 0 : index
    %166 = vector.load %arg3[%c16, %c0_21] : memref<32x32xf32, #tpu.memory_space<vmem>>, vector<8x32xf32>
    %cst_22 = arith.constant dense<0.000000e+00> : vector<16x32xf32>
    %167 = tpu.matmul %165, %166, %cst_22 {dimension_numbers = #tpu.dot_dimension_numbers<[1], [0], [0], [1], [0, 0, 1, 1], [], []>} : vector<16x8xf32>, vector<8x32xf32>, vector<16x32xf32> -> vector<16x32xf32>
    %168 = arith.addf %114, %167 : vector<16x32xf32>
    %169 = vector.extract_strided_slice %3 {offsets = [0, 24], sizes = [16, 8], strides = [1, 1]} : vector<16x32xf32> to vector<16x8xf32>
    %170 = vector.extract_strided_slice %4 {offsets = [0, 0], sizes = [16, 8], strides = [1, 1]} : vector<16x32xf32> to vector<16x8xf32>
    %171 = arith.mulf %169, %170 : vector<16x8xf32>
    %cst_23 = arith.constant dense<0.000000e+00> : vector<16xf32>
    %172 = vector.multi_reduction <add>, %171, %cst_23 [1] : vector<16x8xf32> to vector<16xf32>
    %173 = vector.shape_cast %172 : vector<16xf32> to vector<16x1xf32>
    %174 = vector.extract_strided_slice %4 {offsets = [0, 8], sizes = [16, 8], strides = [1, 1]} : vector<16x32xf32> to vector<16x8xf32>
    %175 = arith.mulf %169, %174 : vector<16x8xf32>
    %cst_24 = arith.constant dense<0.000000e+00> : vector<16xf32>
    %176 = vector.multi_reduction <add>, %175, %cst_24 [1] : vector<16x8xf32> to vector<16xf32>
    %177 = vector.shape_cast %176 : vector<16xf32> to vector<16x1xf32>
    %178 = vector.extract_strided_slice %4 {offsets = [0, 16], sizes = [16, 8], strides = [1, 1]} : vector<16x32xf32> to vector<16x8xf32>
    %179 = arith.mulf %169, %178 : vector<16x8xf32>
    %cst_25 = arith.constant dense<0.000000e+00> : vector<16xf32>
    %180 = vector.multi_reduction <add>, %179, %cst_25 [1] : vector<16x8xf32> to vector<16xf32>
    %181 = vector.shape_cast %180 : vector<16xf32> to vector<16x1xf32>
    %182 = vector.extract_strided_slice %4 {offsets = [0, 24], sizes = [16, 8], strides = [1, 1]} : vector<16x32xf32> to vector<16x8xf32>
    %183 = arith.mulf %169, %182 : vector<16x8xf32>
    %cst_26 = arith.constant dense<0.000000e+00> : vector<16xf32>
    %184 = vector.multi_reduction <add>, %183, %cst_26 [1] : vector<16x8xf32> to vector<16xf32>
    %185 = vector.shape_cast %184 : vector<16xf32> to vector<16x1xf32>
    %186 = arith.maximumf %173, %177 : vector<16x1xf32>
    %187 = arith.maximumf %186, %181 : vector<16x1xf32>
    %188 = arith.maximumf %187, %185 : vector<16x1xf32>
    %189 = arith.subf %173, %188 : vector<16x1xf32>
    %190 = math.exp %189 : vector<16x1xf32>
    %191 = arith.subf %177, %188 : vector<16x1xf32>
    %192 = math.exp %191 : vector<16x1xf32>
    %193 = arith.subf %181, %188 : vector<16x1xf32>
    %194 = math.exp %193 : vector<16x1xf32>
    %195 = arith.subf %185, %188 : vector<16x1xf32>
    %196 = math.exp %195 : vector<16x1xf32>
    %197 = arith.addf %190, %192 : vector<16x1xf32>
    %198 = arith.addf %197, %194 : vector<16x1xf32>
    %199 = arith.addf %198, %196 : vector<16x1xf32>
    %200 = tpu.reciprocal %199 {approx = true} : vector<16x1xf32> -> vector<16x1xf32>
    %201 = arith.mulf %190, %200 : vector<16x1xf32>
    %202 = vector.extract_strided_slice %5 {offsets = [0, 0], sizes = [16, 8], strides = [1, 1]} : vector<16x32xf32> to vector<16x8xf32>
    %203 = vector.broadcast %201 : vector<16x1xf32> to vector<16x8xf32>
    %204 = arith.mulf %203, %202 : vector<16x8xf32>
    %205 = arith.mulf %192, %200 : vector<16x1xf32>
    %206 = vector.extract_strided_slice %5 {offsets = [0, 8], sizes = [16, 8], strides = [1, 1]} : vector<16x32xf32> to vector<16x8xf32>
    %207 = vector.broadcast %205 : vector<16x1xf32> to vector<16x8xf32>
    %208 = arith.mulf %207, %206 : vector<16x8xf32>
    %209 = arith.addf %204, %208 : vector<16x8xf32>
    %210 = arith.mulf %194, %200 : vector<16x1xf32>
    %211 = vector.extract_strided_slice %5 {offsets = [0, 16], sizes = [16, 8], strides = [1, 1]} : vector<16x32xf32> to vector<16x8xf32>
    %212 = vector.broadcast %210 : vector<16x1xf32> to vector<16x8xf32>
    %213 = arith.mulf %212, %211 : vector<16x8xf32>
    %214 = arith.addf %209, %213 : vector<16x8xf32>
    %215 = arith.mulf %196, %200 : vector<16x1xf32>
    %216 = vector.extract_strided_slice %5 {offsets = [0, 24], sizes = [16, 8], strides = [1, 1]} : vector<16x32xf32> to vector<16x8xf32>
    %217 = vector.broadcast %215 : vector<16x1xf32> to vector<16x8xf32>
    %218 = arith.mulf %217, %216 : vector<16x8xf32>
    %219 = arith.addf %214, %218 : vector<16x8xf32>
    %c24 = arith.constant 24 : index
    %c0_27 = arith.constant 0 : index
    %220 = vector.load %arg3[%c24, %c0_27] : memref<32x32xf32, #tpu.memory_space<vmem>>, vector<8x32xf32>
    %cst_28 = arith.constant dense<0.000000e+00> : vector<16x32xf32>
    %221 = tpu.matmul %219, %220, %cst_28 {dimension_numbers = #tpu.dot_dimension_numbers<[1], [0], [0], [1], [0, 0, 1, 1], [], []>} : vector<16x8xf32>, vector<8x32xf32>, vector<16x32xf32> -> vector<16x32xf32>
    %222 = arith.addf %168, %221 : vector<16x32xf32>
    %c0_29 = arith.constant 0 : index
    %c0_30 = arith.constant 0 : index
    %223 = vector.load %arg4[%c0_29, %c0_30] : memref<1x32xf32, #tpu.memory_space<vmem>>, vector<1x32xf32>
    %224 = vector.broadcast %223 : vector<1x32xf32> to vector<16x32xf32>
    %225 = arith.addf %222, %224 : vector<16x32xf32>
    %c0_31 = arith.constant 0 : index
    %c0_32 = arith.constant 0 : index
    %226 = vector.load %arg5[%c0_31, %c0_32] : memref<16x32xf32, #tpu.memory_space<vmem>>, vector<16x32xf32>
    tpu.vector_store %arg5[%c0_31, %c0_32], %225 {strides = array<i32>} : memref<16x32xf32, #tpu.memory_space<vmem>>, vector<16x32xf32>,
    return
  }
  func.func @transform_0(%arg0: i32) -> (i32, i32) {
    %c0_i32 = arith.constant 0 : i32
    %c0_i32_0 = arith.constant 0 : i32
    return %arg0, %c0_i32 : i32, i32
  }
  func.func @transform_1(%arg0: i32) -> (i32, i32) {
    %c0_i32 = arith.constant 0 : i32
    %c0_i32_0 = arith.constant 0 : i32
    %c0_i32_1 = arith.constant 0 : i32
    return %c0_i32, %c0_i32_0 : i32, i32
  }
  func.func @transform_2(%arg0: i32) -> (i32, i32) {
    %c0_i32 = arith.constant 0 : i32
    %c0_i32_0 = arith.constant 0 : i32
    %c0_i32_1 = arith.constant 0 : i32
    return %c0_i32, %c0_i32_0 : i32, i32
  }
  func.func @transform_3(%arg0: i32) -> (i32, i32) {
    %c0_i32 = arith.constant 0 : i32
    %c0_i32_0 = arith.constant 0 : i32
    %c0_i32_1 = arith.constant 0 : i32
    return %c0_i32, %c0_i32_0 : i32, i32
  }
  func.func @transform_4(%arg0: i32) -> (i32, i32) {
    %c0_i32 = arith.constant 0 : i32
    %c0_i32_0 = arith.constant 0 : i32
    return %arg0, %c0_i32 : i32, i32
  }
}

</mosaic_0001>

<llo_original>
// kernel: tpu_custom_call.1
$region0: #{tpu_custom_call.1}
  #allocation0 [shape = 'u32[]', space=smem, size = 0x4, offset = 0x4, fixed_abs, tag = 'smem constant byte address 0x4 - core index']
  #allocation1 [shape = 'u32[144,128]{1,0:T(1,128)}', space=vmem, size = 0x12000, scoped, tag = 'internal scratch']
  %s0 = inlined_call_operand.hbm [shape: f32[16,32], index: 0, kind: input, shape index: {}]
  %s1 = inlined_call_operand.hbm [shape: f32[32,96], index: 1, kind: input, shape index: {}]
  %s2 = inlined_call_operand.hbm [shape: f32[32,32], index: 2, kind: input, shape index: {}]
  %s3 = inlined_call_operand.vmem [shape: f32[1,32], index: 3, kind: input, shape index: {}]
  %s4 = inlined_call_operand.hbm [shape: f32[16,32], index: 4, kind: output, shape index: {}]
  %s5 = sld [smem:[#allocation0]]
  $region38: #{tpu_custom_call.1} parent=0
    _
  %s7 = ssub.s32 1, %s5
  %s8 = scalar_select 0, %s7, %s5
  $region1: #{tpu_custom_call.1} parent=0
    #allocation2 [shape = 'u8[8192]{0}', space=vmem, size = 0x2000, scoped, tag = 'input window, operand 0, single buffered']
    #allocation3 [shape = 's32[1]{0}', space=sflag, size = 0x4, scoped, tag = 'scoped memory for tpu_custom_call.1']
    #allocation4 [shape = 's32[1]{0}', space=sflag, size = 0x4, scoped, tag = 'scoped memory for tpu_custom_call.1']
    #allocation5 [shape = 'u8[16384]{0}', space=vmem, size = 0x4000, scoped, tag = 'input window, operand 1, single buffered']
    #allocation6 [shape = 's32[1]{0}', space=sflag, size = 0x4, scoped, tag = 'scoped memory for tpu_custom_call.1']
    #allocation7 [shape = 'u8[16384]{0}', space=vmem, size = 0x4000, scoped, tag = 'input window, operand 2, single buffered']
    #allocation8 [shape = 'u8[8192]{0}', space=vmem, size = 0x2000, scoped, tag = 'output window, operand 0, single buffered']
    %9 = vsyncpa [#allocation3], 0
    %10 = vsyncpa [#allocation6], 0
    %11 = vsyncpa [#allocation4], 0
    // Predicated region
    $region2: #{tpu_custom_call.1} parent=1 // pred_check
      _
    $region3: #{tpu_custom_call.1} parent=1 // pred_check_branch
      %13 = sbr.rel (0) target = $region5
    $region4: #{tpu_custom_call.1} parent=1 // pred_region
      %s15 = ssub.s32 256, 256
      %16 = vsyncadd [#allocation3], %s15
      %s17 = sshll.u32 [#allocation2], 4
      %s18 = int_to_ptr.vmem [resolvable:$true] %s17
      %23 = dma.hbm_to_vmem [thread:$0]  %s0, 256, %s18, [#allocation3], 128, 128, 8
    $region5: #{tpu_custom_call.1} parent=1 // pred_fallthru
      _
    // Predicated region
    $region6: #{tpu_custom_call.1} parent=1 // pred_check
      _
    $region7: #{tpu_custom_call.1} parent=1 // pred_check_branch
      %25 = sbr.rel (0) target = $region9
    $region8: #{tpu_custom_call.1} parent=1 // pred_region
      %s27 = ssub.s32 512, 512
      %28 = vsyncadd [#allocation6], %s27
      %s29 = sshll.u32 [#allocation5], 4
      %s30 = int_to_ptr.vmem [resolvable:$true] %s29
      %35 = dma.hbm_to_vmem [thread:$0]  %s1, 512, %s30, [#allocation6], 128, 128, 8
    $region9: #{tpu_custom_call.1} parent=1 // pred_fallthru
      _
    // Predicated region
    $region10: #{tpu_custom_call.1} parent=1 // pred_check
      _
    $region11: #{tpu_custom_call.1} parent=1 // pred_check_branch
      %37 = sbr.rel (0) target = $region13
    $region12: #{tpu_custom_call.1} parent=1 // pred_region
      %s39 = ssub.s32 512, 512
      %40 = vsyncadd [#allocation6], %s39
      %s41 = sshll.u32 [#allocation7], 4
      %s42 = int_to_ptr.vmem [resolvable:$true] %s41
      %47 = dma.hbm_to_vmem [thread:$0]  %s2, 512, %s42, [#allocation6], 128, 128, 8
    $region13: #{tpu_custom_call.1} parent=1 // pred_fallthru
      _
    // Predicated region
    $region14: #{tpu_custom_call.1} parent=1 // pred_check
      _
    $region15: #{tpu_custom_call.1} parent=1 // pred_check_branch
      %49 = sbr.rel (0) target = $region17
    $region16: #{tpu_custom_call.1} parent=1 // pred_region
      _
    $region17: #{tpu_custom_call.1} parent=1 // pred_fallthru
      _
    // Predicated region
    $region18: #{tpu_custom_call.1} parent=1 // pred_check
      _
    $region19: #{tpu_custom_call.1} parent=1 // pred_check_branch
      %51 = sbr.rel (0) target = $region21
    $region20: #{tpu_custom_call.1} parent=1 // pred_region
      %52 = dma.done [#allocation3], 256
    $region21: #{tpu_custom_call.1} parent=1 // pred_fallthru
      _
    // Predicated region
    $region22: #{tpu_custom_call.1} parent=1 // pred_check
      _
    $region23: #{tpu_custom_call.1} parent=1 // pred_check_branch
      %54 = sbr.rel (0) target = $region25
    $region24: #{tpu_custom_call.1} parent=1 // pred_region
      %55 = dma.done [#allocation6], 512
    $region25: #{tpu_custom_call.1} parent=1 // pred_fallthru
      _
    // Predicated region
    $region26: #{tpu_custom_call.1} parent=1 // pred_check
      _
    $region27: #{tpu_custom_call.1} parent=1 // pred_check_branch
      %57 = sbr.rel (0) target = $region29
    $region28: #{tpu_custom_call.1} parent=1 // pred_region
      %58 = dma.done [#allocation6], 512
    $region29: #{tpu_custom_call.1} parent=1 // pred_fallthru
      _
    %v59 = vld [vmem:[#allocation2] sm:$0xff]
    %v60 = vld [vmem:[#allocation2 + $0x8] sm:$0xff]
    %v61 = vld [vmem:[#allocation5] sm:$0xff]
    %v62 = vld [vmem:[#allocation5 + $0x8] sm:$0xff]
    %v63 = vld [vmem:[#allocation5 + $0x10] sm:$0xff]
    %v64 = vld [vmem:[#allocation5 + $0x18] sm:$0xff]
    %vm65 = vcmask 261120
    %v67 = vsel %vm65, %v59, 0
    %v70 = vsel %vm65, %v60, 0
    %72 = vmatprep.subr.mxu0 0.0
    %73 = vmatpush1.msra.mxu0 %v61
    %74 = vmatprep.subr.mxu0 0.0
    %75 = vmatpush1.msra.mxu0 %v62
    %76 = vmatprep.subr.mxu0 0.0
    %77 = vmatpush1.msra.mxu0 %v63
    %78 = vmatprep.subr.mxu0 0.0
    %79 = vmatpush1.msra.mxu0 %v64
    %80 = vmatprep.subr.mxu0 0.0
    %81 = vmatpush1.msra.mxu0 0.0
    %82 = vmatprep.subr.mxu0 0.0
    %83 = vmatpush1.msra.mxu0 0.0
    %84 = vmatprep.subr.mxu0 0.0
    %85 = vmatpush1.msra.mxu0 0.0
    %86 = vmatprep.subr.mxu0 0.0
    %87 = vmatpush1.msra.mxu0 0.0
    %88 = vmatprep.subr.mxu0 0.0
    %89 = vmatpush1.msra.mxu0 0.0
    %90 = vmatprep.subr.mxu0 0.0
    %91 = vmatpush1.msra.mxu0 0.0
    %92 = vmatprep.subr.mxu0 0.0
    %93 = vmatpush1.msra.mxu0 0.0
    %94 = vmatprep.subr.mxu0 0.0
    %95 = vmatpush1.msra.mxu0 0.0
    %96 = vmatprep.subr.mxu0 0.0
    %97 = vmatpush1.msra.mxu0 0.0
    %98 = vmatprep.subr.mxu0 0.0
    %99 = vmatpush1.msra.mxu0 0.0
    %100 = vmatprep.subr.mxu0 0.0
    %101 = vmatpush1.msra.mxu0 0.0
    %102 = vmatprep.subr.mxu0 0.0
    %103 = vmatpush1.msra.mxu0 0.0
    %104 = vmatprep.subr.mxu0 0.0
    %105 = vmatpush1.msra.mxu0 0.0
    %106 = vmatprep.subr.mxu0 0.0
    %107 = vmatpush1.msra.mxu0 0.0
    %108 = vmatprep.subr.mxu0 0.0
    %109 = vmatpush1.msra.mxu0 0.0
    %110 = vmatprep.subr.mxu0 0.0
    %111 = vmatpush1.msra.mxu0 0.0
    %112 = vmatprep.subr.mxu0 0.0
    %113 = vmatpush1.msra.mxu0 0.0
    %114 = vmatprep.subr.mxu0 0.0
    %115 = vmatpush1.msra.mxu0 0.0
    %116 = vmatprep.subr.mxu0 0.0
    %117 = vmatpush1.msra.mxu0 0.0
    %118 = vmatprep.subr.mxu0 0.0
    %119 = vmatpush1.msra.mxu0 0.0
    %120 = vmatprep.subr.mxu0 0.0
    %121 = vmatpush1.msra.mxu0 0.0
    %122 = vmatprep.subr.mxu0 0.0
    %123 = vmatpush1.msra.mxu0 0.0
    %124 = vmatprep.subr.mxu0 0.0
    %125 = vmatpush1.msra.mxu0 0.0
    %126 = vmatprep.subr.mxu0 0.0
    %127 = vmatpush1.msra.mxu0 0.0
    %128 = vmatprep.subr.mxu0 0.0
    %129 = vmatpush1.msra.mxu0 0.0
    %130 = vmatprep.subr.mxu0 0.0
    %131 = vmatpush1.msra.mxu0 0.0
    %132 = vmatprep.subr.mxu0 0.0
    %133 = vmatpush1.msra.mxu0 0.0
    %134 = vmatprep.subr.mxu0 0.0
    %135 = vmatpush1.msra.mxu0 0.0
    %136 = vmatprep.mubr.f32.mxu0 0.0
    %137 = vmatmul.mubr.f32.gmra.mrb[0].mxu0 %v67
    %v138 = vpop.f32.mrb[0].mxu0
    %v139 = vadd.f32 0.0, %v138
    %v140 = vpop.f32.mrb[0].mxu0
    %141 = vmatprep.mubr.f32.mxu0 0.0
    %142 = vmatmul.mubr.f32.gmra.mrb[0].mxu0 %v70
    %v143 = vpop.f32.mrb[0].mxu0
    %v144 = vadd.f32 0.0, %v143
    %v145 = vpop.f32.mrb[0].mxu0
    %146 = vdwg.mxu0
    %149 = vrot.lane.b32.xlu0 %v139, 96
    %v150 = vpop.permute.xlu0 %149
    %151 = vrot.lane.b32.xlu0 %v144, 96
    %v152 = vpop.permute.xlu0 %151
    %v155 = vmul.f32 %v139, %v150
    %v156 = vmul.f32 %v144, %v152
    %vm157 = vcmask 64512
    %v158 = vsel %vm157, %v155, 0.0
    %159 = vadd.xlane.f32.xlu0 %v158
    %v160 = vpop.xlane.xlu0 %159
    %v161 = vsel %vm157, %v156, 0.0
    %162 = vadd.xlane.f32.xlu0 %v161
    %v163 = vpop.xlane.xlu0 %162
    %164 = vrot.lane.b32.xlu0 %v139, 88
    %v165 = vpop.permute.xlu0 %164
    %166 = vrot.lane.b32.xlu0 %v144, 88
    %v167 = vpop.permute.xlu0 %166
    %v170 = vmul.f32 %v139, %v165
    %v171 = vmul.f32 %v144, %v167
    %v172 = vsel %vm157, %v170, 0.0
    %173 = vadd.xlane.f32.xlu0 %v172
    %v174 = vpop.xlane.xlu0 %173
    %v175 = vsel %vm157, %v171, 0.0
    %176 = vadd.xlane.f32.xlu0 %v175
    %v177 = vpop.xlane.xlu0 %176
    %178 = vrot.lane.b32.xlu0 %v139, 80
    %v179 = vpop.permute.xlu0 %178
    %180 = vrot.lane.b32.xlu0 %v144, 80
    %v181 = vpop.permute.xlu0 %180
    %v184 = vmul.f32 %v139, %v179
    %v185 = vmul.f32 %v144, %v181
    %v186 = vsel %vm157, %v184, 0.0
    %187 = vadd.xlane.f32.xlu0 %v186
    %v188 = vpop.xlane.xlu0 %187
    %v189 = vsel %vm157, %v185, 0.0
    %190 = vadd.xlane.f32.xlu0 %v189
    %v191 = vpop.xlane.xlu0 %190
    %192 = vrot.lane.b32.xlu0 %v139, 72
    %v193 = vpop.permute.xlu0 %192
    %194 = vrot.lane.b32.xlu0 %v144, 72
    %v195 = vpop.permute.xlu0 %194
    %v198 = vmul.f32 %v139, %v193
    %v199 = vmul.f32 %v144, %v195
    %v200 = vsel %vm157, %v198, 0.0
    %201 = vadd.xlane.f32.xlu0 %v200
    %v202 = vpop.xlane.xlu0 %201
    %v203 = vsel %vm157, %v199, 0.0
    %204 = vadd.xlane.f32.xlu0 %v203
    %v205 = vpop.xlane.xlu0 %204
    %v206 = vmax.f32 %v160, %v174
    %v207 = vmax.f32 %v163, %v177
    %v208 = vmax.f32 %v206, %v188
    %v209 = vmax.f32 %v207, %v191
    %v210 = vmax.f32 %v208, %v202
    %v211 = vmax.f32 %v209, %v205
    %v212 = vsub.f32 %v160, %v210
    %v213 = vsub.f32 %v163, %v211
    %v214 = vmul.f32 %v212, 1.442695
    %v215 = vpow.pop %v214
    %v216 = vmul.f32 %v213, 1.442695
    %v217 = vpow.pop %v216
    %v218 = vsub.f32 %v174, %v210
    %v219 = vsub.f32 %v177, %v211
    %v220 = vmul.f32 %v218, 1.442695
    %v221 = vpow.pop %v220
    %v222 = vmul.f32 %v219, 1.442695
    %v223 = vpow.pop %v222
    %v224 = vsub.f32 %v188, %v210
    %v225 = vsub.f32 %v191, %v211
    %v226 = vmul.f32 %v224, 1.442695
    %v227 = vpow.pop %v226
    %v228 = vmul.f32 %v225, 1.442695
    %v229 = vpow.pop %v228
    %v230 = vsub.f32 %v202, %v210
    %v231 = vsub.f32 %v205, %v211
    %v232 = vmul.f32 %v230, 1.442695
    %v233 = vpow.pop %v232
    %v234 = vmul.f32 %v231, 1.442695
    %v235 = vpow.pop %v234
    %v236 = vadd.f32 %v215, %v221
    %v237 = vadd.f32 %v217, %v223
    %v238 = vadd.f32 %v236, %v227
    %v239 = vadd.f32 %v237, %v229
    %v240 = vadd.f32 %v238, %v233
    %v241 = vadd.f32 %v239, %v235
    %v242 = vrcp.pop %v240
    %v243 = vrcp.pop %v241
    %v244 = vmul.f32 %v215, %v242
    %v245 = vmul.f32 %v217, %v243
    %v246 = vmul.f32 %v244, %v139
    %v247 = vmul.f32 %v245, %v144
    %v248 = vmul.f32 %v221, %v242
    %v249 = vmul.f32 %v223, %v243
    %v250 = vmul.f32 %v248, %v139
    %v251 = vmul.f32 %v249, %v144
    %254 = vrot.lane.b32.xlu0 %v250, 120
    %v255 = vpop.permute.xlu0 %254
    %256 = vrot.lane.b32.xlu0 %v251, 120
    %v257 = vpop.permute.xlu0 %256
    %v260 = vadd.f32 %v246, %v255
    %v261 = vadd.f32 %v247, %v257
    %v262 = vmul.f32 %v227, %v242
    %v263 = vmul.f32 %v229, %v243
    %v264 = vmul.f32 %v262, %v139
    %v265 = vmul.f32 %v263, %v144
    %268 = vrot.lane.b32.xlu0 %v264, 112
    %v269 = vpop.permute.xlu0 %268
    %270 = vrot.lane.b32.xlu0 %v265, 112
    %v271 = vpop.permute.xlu0 %270
    %v274 = vadd.f32 %v260, %v269
    %v275 = vadd.f32 %v261, %v271
    %v276 = vmul.f32 %v233, %v242
    %v277 = vmul.f32 %v235, %v243
    %v278 = vmul.f32 %v276, %v139
    %v279 = vmul.f32 %v277, %v144
    %282 = vrot.lane.b32.xlu0 %v278, 104
    %v283 = vpop.permute.xlu0 %282
    %284 = vrot.lane.b32.xlu0 %v279, 104
    %v285 = vpop.permute.xlu0 %284
    %v288 = vadd.f32 %v274, %v283
    %v289 = vadd.f32 %v275, %v285
    %v290 = vld [vmem:[#allocation7] sm:$0xff]
    %291 = vrot.lane.b32.xlu0 %v139, 104
    %v292 = vpop.permute.xlu0 %291
    %293 = vrot.lane.b32.xlu0 %v144, 104
    %v294 = vpop.permute.xlu0 %293
    %v297 = vmul.f32 %v139, %v292
    %v298 = vmul.f32 %v144, %v294
    %301 = vrot.lane.b32.xlu0 %v297, 120
    %v302 = vpop.permute.xlu0 %301
    %303 = vrot.lane.b32.xlu0 %v298, 120
    %v304 = vpop.permute.xlu0 %303
    %v307 = vsel %vm157, %v302, 0.0
    %308 = vadd.xlane.f32.xlu0 %v307
    %v309 = vpop.xlane.xlu0 %308
    %v310 = vsel %vm157, %v304, 0.0
    %311 = vadd.xlane.f32.xlu0 %v310
    %v312 = vpop.xlane.xlu0 %311
    %315 = vrot.lane.b32.xlu0 %v155, 120
    %v316 = vpop.permute.xlu0 %315
    %317 = vrot.lane.b32.xlu0 %v156, 120
    %v318 = vpop.permute.xlu0 %317
    %v321 = vsel %vm157, %v316, 0.0
    %322 = vadd.xlane.f32.xlu0 %v321
    %v323 = vpop.xlane.xlu0 %322
    %v324 = vsel %vm157, %v318, 0.0
    %325 = vadd.xlane.f32.xlu0 %v324
    %v326 = vpop.xlane.xlu0 %325
    %329 = vrot.lane.b32.xlu0 %v170, 120
    %v330 = vpop.permute.xlu0 %329
    %331 = vrot.lane.b32.xlu0 %v171, 120
    %v332 = vpop.permute.xlu0 %331
    %v335 = vsel %vm157, %v330, 0.0
    %336 = vadd.xlane.f32.xlu0 %v335
    %v337 = vpop.xlane.xlu0 %336
    %v338 = vsel %vm157, %v332, 0.0
    %339 = vadd.xlane.f32.xlu0 %v338
    %v340 = vpop.xlane.xlu0 %339
    %343 = vrot.lane.b32.xlu0 %v184, 120
    %v344 = vpop.permute.xlu0 %343
    %345 = vrot.lane.b32.xlu0 %v185, 120
    %v346 = vpop.permute.xlu0 %345
    %v349 = vsel %vm157, %v344, 0.0
    %350 = vadd.xlane.f32.xlu0 %v349
    %v351 = vpop.xlane.xlu0 %350
    %v352 = vsel %vm157, %v346, 0.0
    %353 = vadd.xlane.f32.xlu0 %v352
    %v354 = vpop.xlane.xlu0 %353
    %v355 = vmax.f32 %v309, %v323
    %v356 = vmax.f32 %v312, %v326
    %v357 = vmax.f32 %v355, %v337
    %v358 = vmax.f32 %v356, %v340
    %v359 = vmax.f32 %v357, %v351
    %v360 = vmax.f32 %v358, %v354
    %v361 = vsub.f32 %v309, %v359
    %v362 = vsub.f32 %v312, %v360
    %v363 = vmul.f32 %v361, 1.442695
    %v364 = vpow.pop %v363
    %v365 = vmul.f32 %v362, 1.442695
    %v366 = vpow.pop %v365
    %v367 = vsub.f32 %v323, %v359
    %v368 = vsub.f32 %v326, %v360
    %v369 = vmul.f32 %v367, 1.442695
    %v370 = vpow.pop %v369
    %v371 = vmul.f32 %v368, 1.442695
    %v372 = vpow.pop %v371
    %v373 = vsub.f32 %v337, %v359
    %v374 = vsub.f32 %v340, %v360
    %v375 = vmul.f32 %v373, 1.442695
    %v376 = vpow.pop %v375
    %v377 = vmul.f32 %v374, 1.442695
    %v378 = vpow.pop %v377
    %v379 = vsub.f32 %v351, %v359
    %v380 = vsub.f32 %v354, %v360
    %v381 = vmul.f32 %v379, 1.442695
    %v382 = vpow.pop %v381
    %v383 = vmul.f32 %v380, 1.442695
    %v384 = vpow.pop %v383
    %v385 = vadd.f32 %v364, %v370
    %v386 = vadd.f32 %v366, %v372
    %v387 = vadd.f32 %v385, %v376
    %v388 = vadd.f32 %v386, %v378
    %v389 = vadd.f32 %v387, %v382
    %v390 = vadd.f32 %v388, %v384
    %v391 = vrcp.pop %v389
    %v392 = vrcp.pop %v390
    %v393 = vmul.f32 %v364, %v391
    %v394 = vmul.f32 %v366, %v392
    %v395 = vmul.f32 %v393, %v139
    %v396 = vmul.f32 %v394, %v144
    %v397 = vmul.f32 %v370, %v391
    %v398 = vmul.f32 %v372, %v392
    %v399 = vmul.f32 %v397, %v139
    %v400 = vmul.f32 %v398, %v144
    %403 = vrot.lane.b32.xlu0 %v399, 120
    %v404 = vpop.permute.xlu0 %403
    %405 = vrot.lane.b32.xlu0 %v400, 120
    %v406 = vpop.permute.xlu0 %405
    %v409 = vadd.f32 %v395, %v404
    %v410 = vadd.f32 %v396, %v406
    %v411 = vmul.f32 %v376, %v391
    %v412 = vmul.f32 %v378, %v392
    %v413 = vmul.f32 %v411, %v139
    %v414 = vmul.f32 %v412, %v144
    %417 = vrot.lane.b32.xlu0 %v413, 112
    %v418 = vpop.permute.xlu0 %417
    %419 = vrot.lane.b32.xlu0 %v414, 112
    %v420 = vpop.permute.xlu0 %419
    %v423 = vadd.f32 %v409, %v418
    %v424 = vadd.f32 %v410, %v420
    %v425 = vmul.f32 %v382, %v391
    %v426 = vmul.f32 %v384, %v392
    %v427 = vmul.f32 %v425, %v139
    %v428 = vmul.f32 %v426, %v144
    %431 = vrot.lane.b32.xlu0 %v427, 104
    %v432 = vpop.permute.xlu0 %431
    %433 = vrot.lane.b32.xlu0 %v428, 104
    %v434 = vpop.permute.xlu0 %433
    %v437 = vadd.f32 %v423, %v432
    %v438 = vadd.f32 %v424, %v434
    %v439 = vld [vmem:[#allocation7 + $0x8] sm:$0xff]
    %442 = vrot.lane.b32.xlu0 %v437, 64
    %v443 = vpop.permute.xlu0 %442
    %444 = vrot.lane.b32.xlu0 %v438, 64
    %v445 = vpop.permute.xlu0 %444
    %v446 = vsel %vm157, %v443, 0
    %v448 = vsel %vm157, %v445, 0
    %450 = vmatprep.subr.mxu0 0.0
    %451 = vmatpush1.msra.mxu0 %v439
    %452 = vmatprep.subr.mxu0 0.0
    %453 = vmatpush1.msra.mxu0 0.0
    %454 = vmatprep.subr.mxu0 0.0
    %455 = vmatpush1.msra.mxu0 0.0
    %456 = vmatprep.subr.mxu0 0.0
    %457 = vmatpush1.msra.mxu0 0.0
    %458 = vmatprep.subr.mxu0 0.0
    %459 = vmatpush1.msra.mxu0 0.0
    %460 = vmatprep.subr.mxu0 0.0
    %461 = vmatpush1.msra.mxu0 0.0
    %462 = vmatprep.subr.mxu0 0.0
    %463 = vmatpush1.msra.mxu0 0.0
    %464 = vmatprep.subr.mxu0 0.0
    %465 = vmatpush1.msra.mxu0 0.0
    %466 = vmatprep.subr.mxu0 0.0
    %467 = vmatpush1.msra.mxu0 0.0
    %468 = vmatprep.subr.mxu0 0.0
    %469 = vmatpush1.msra.mxu0 0.0
    %470 = vmatprep.subr.mxu0 0.0
    %471 = vmatpush1.msra.mxu0 0.0
    %472 = vmatprep.subr.mxu0 0.0
    %473 = vmatpush1.msra.mxu0 0.0
    %474 = vmatprep.subr.mxu0 0.0
    %475 = vmatpush1.msra.mxu0 0.0
    %476 = vmatprep.subr.mxu0 0.0
    %477 = vmatpush1.msra.mxu0 0.0
    %478 = vmatprep.subr.mxu0 0.0
    %479 = vmatpush1.msra.mxu0 0.0
    %480 = vmatprep.subr.mxu0 0.0
    %481 = vmatpush1.msra.mxu0 0.0
    %482 = vmatprep.subr.mxu0 0.0
    %483 = vmatpush1.msra.mxu0 0.0
    %484 = vmatprep.subr.mxu0 0.0
    %485 = vmatpush1.msra.mxu0 0.0
    %486 = vmatprep.subr.mxu0 0.0
    %487 = vmatpush1.msra.mxu0 0.0
    %488 = vmatprep.subr.mxu0 0.0
    %489 = vmatpush1.msra.mxu0 0.0
    %490 = vmatprep.subr.mxu0 0.0
    %491 = vmatpush1.msra.mxu0 0.0
    %492 = vmatprep.subr.mxu0 0.0
    %493 = vmatpush1.msra.mxu0 0.0
    %494 = vmatprep.subr.mxu0 0.0
    %495 = vmatpush1.msra.mxu0 0.0
    %496 = vmatprep.subr.mxu0 0.0
    %497 = vmatpush1.msra.mxu0 0.0
    %498 = vmatprep.subr.mxu0 0.0
    %499 = vmatpush1.msra.mxu0 0.0
    %500 = vmatprep.subr.mxu0 0.0
    %501 = vmatpush1.msra.mxu0 0.0
    %502 = vmatprep.subr.mxu0 0.0
    %503 = vmatpush1.msra.mxu0 0.0
    %504 = vmatprep.subr.mxu0 0.0
    %505 = vmatpush1.msra.mxu0 0.0
    %506 = vmatprep.subr.mxu0 0.0
    %507 = vmatpush1.msra.mxu0 0.0
    %508 = vmatprep.subr.mxu0 0.0
    %509 = vmatpush1.msra.mxu0 0.0
    %510 = vmatprep.subr.mxu0 0.0
    %511 = vmatpush1.msra.mxu0 0.0
    %512 = vmatprep.subr.mxu0 0.0
    %513 = vmatpush1.msra.mxu0 0.0
    %514 = vmatprep.mubr.f32.mxu0 0.0
    %515 = vmatmul.mubr.f32.gmra.mrb[0].mxu0 %v446
    %v516 = vpop.f32.mrb[0].mxu0
    %v517 = vadd.f32 0.0, %v516
    %v518 = vpop.f32.mrb[0].mxu0
    %519 = vmatprep.mubr.f32.mxu0 0.0
    %520 = vmatmul.mubr.f32.gmra.mrb[0].mxu0 %v448
    %v521 = vpop.f32.mrb[0].mxu0
    %v522 = vadd.f32 0.0, %v521
    %v523 = vpop.f32.mrb[0].mxu0
    %524 = vdwg.mxu0
    %527 = vrot.lane.b32.xlu0 %v288, 64
    %v528 = vpop.permute.xlu0 %527
    %529 = vrot.lane.b32.xlu0 %v289, 64
    %v530 = vpop.permute.xlu0 %529
    %v531 = vsel %vm157, %v528, 0
    %v533 = vsel %vm157, %v530, 0
    %535 = vmatprep.subr.mxu0 0.0
    %536 = vmatpush1.msra.mxu0 %v290
    %537 = vmatprep.subr.mxu0 0.0
    %538 = vmatpush1.msra.mxu0 0.0
    %539 = vmatprep.subr.mxu0 0.0
    %540 = vmatpush1.msra.mxu0 0.0
    %541 = vmatprep.subr.mxu0 0.0
    %542 = vmatpush1.msra.mxu0 0.0
    %543 = vmatprep.subr.mxu0 0.0
    %544 = vmatpush1.msra.mxu0 0.0
    %545 = vmatprep.subr.mxu0 0.0
    %546 = vmatpush1.msra.mxu0 0.0
    %547 = vmatprep.subr.mxu0 0.0
    %548 = vmatpush1.msra.mxu0 0.0
    %549 = vmatprep.subr.mxu0 0.0
    %550 = vmatpush1.msra.mxu0 0.0
    %551 = vmatprep.subr.mxu0 0.0
    %552 = vmatpush1.msra.mxu0 0.0
    %553 = vmatprep.subr.mxu0 0.0
    %554 = vmatpush1.msra.mxu0 0.0
    %555 = vmatprep.subr.mxu0 0.0
    %556 = vmatpush1.msra.mxu0 0.0
    %557 = vmatprep.subr.mxu0 0.0
    %558 = vmatpush1.msra.mxu0 0.0
    %559 = vmatprep.subr.mxu0 0.0
    %560 = vmatpush1.msra.mxu0 0.0
    %561 = vmatprep.subr.mxu0 0.0
    %562 = vmatpush1.msra.mxu0 0.0
    %563 = vmatprep.subr.mxu0 0.0
    %564 = vmatpush1.msra.mxu0 0.0
    %565 = vmatprep.subr.mxu0 0.0
    %566 = vmatpush1.msra.mxu0 0.0
    %567 = vmatprep.subr.mxu0 0.0
    %568 = vmatpush1.msra.mxu0 0.0
    %569 = vmatprep.subr.mxu0 0.0
    %570 = vmatpush1.msra.mxu0 0.0
    %571 = vmatprep.subr.mxu0 0.0
    %572 = vmatpush1.msra.mxu0 0.0
    %573 = vmatprep.subr.mxu0 0.0
    %574 = vmatpush1.msra.mxu0 0.0
    %575 = vmatprep.subr.mxu0 0.0
    %576 = vmatpush1.msra.mxu0 0.0
    %577 = vmatprep.subr.mxu0 0.0
    %578 = vmatpush1.msra.mxu0 0.0
    %579 = vmatprep.subr.mxu0 0.0
    %580 = vmatpush1.msra.mxu0 0.0
    %581 = vmatprep.subr.mxu0 0.0
    %582 = vmatpush1.msra.mxu0 0.0
    %583 = vmatprep.subr.mxu0 0.0
    %584 = vmatpush1.msra.mxu0 0.0
    %585 = vmatprep.subr.mxu0 0.0
    %586 = vmatpush1.msra.mxu0 0.0
    %587 = vmatprep.subr.mxu0 0.0
    %588 = vmatpush1.msra.mxu0 0.0
    %589 = vmatprep.subr.mxu0 0.0
    %590 = vmatpush1.msra.mxu0 0.0
    %591 = vmatprep.subr.mxu0 0.0
    %592 = vmatpush1.msra.mxu0 0.0
    %593 = vmatprep.subr.mxu0 0.0
    %594 = vmatpush1.msra.mxu0 0.0
    %595 = vmatprep.subr.mxu0 0.0
    %596 = vmatpush1.msra.mxu0 0.0
    %597 = vmatprep.subr.mxu0 0.0
    %598 = vmatpush1.msra.mxu0 0.0
    %599 = vmatprep.mubr.f32.mxu0 0.0
    %600 = vmatmul.mubr.f32.gmra.mrb[0].mxu0 %v531
    %v601 = vpop.f32.mrb[0].mxu0
    %v602 = vadd.f32 %v517, %v601
    %v603 = vpop.f32.mrb[0].mxu0
    %604 = vmatprep.mubr.f32.mxu0 0.0
    %605 = vmatmul.mubr.f32.gmra.mrb[0].mxu0 %v533
    %v606 = vpop.f32.mrb[0].mxu0
    %v607 = vadd.f32 %v522, %v606
    %v608 = vpop.f32.mrb[0].mxu0
    %609 = vdwg.mxu0
    %610 = vrot.lane.b32.xlu0 %v139, 112
    %v611 = vpop.permute.xlu0 %610
    %612 = vrot.lane.b32.xlu0 %v144, 112
    %v613 = vpop.permute.xlu0 %612
    %v616 = vmul.f32 %v139, %v611
    %v617 = vmul.f32 %v144, %v613
    %620 = vrot.lane.b32.xlu0 %v616, 112
    %v621 = vpop.permute.xlu0 %620
    %622 = vrot.lane.b32.xlu0 %v617, 112
    %v623 = vpop.permute.xlu0 %622
    %v626 = vsel %vm157, %v621, 0.0
    %627 = vadd.xlane.f32.xlu0 %v626
    %v628 = vpop.xlane.xlu0 %627
    %v629 = vsel %vm157, %v623, 0.0
    %630 = vadd.xlane.f32.xlu0 %v629
    %v631 = vpop.xlane.xlu0 %630
    %632 = vrot.lane.b32.xlu0 %v297, 112
    %v633 = vpop.permute.xlu0 %632
    %634 = vrot.lane.b32.xlu0 %v298, 112
    %v635 = vpop.permute.xlu0 %634
    %v638 = vsel %vm157, %v633, 0.0
    %639 = vadd.xlane.f32.xlu0 %v638
    %v640 = vpop.xlane.xlu0 %639
    %v641 = vsel %vm157, %v635, 0.0
    %642 = vadd.xlane.f32.xlu0 %v641
    %v643 = vpop.xlane.xlu0 %642
    %644 = vrot.lane.b32.xlu0 %v155, 112
    %v645 = vpop.permute.xlu0 %644
    %646 = vrot.lane.b32.xlu0 %v156, 112
    %v647 = vpop.permute.xlu0 %646
    %v650 = vsel %vm157, %v645, 0.0
    %651 = vadd.xlane.f32.xlu0 %v650
    %v652 = vpop.xlane.xlu0 %651
    %v653 = vsel %vm157, %v647, 0.0
    %654 = vadd.xlane.f32.xlu0 %v653
    %v655 = vpop.xlane.xlu0 %654
    %656 = vrot.lane.b32.xlu0 %v170, 112
    %v657 = vpop.permute.xlu0 %656
    %658 = vrot.lane.b32.xlu0 %v171, 112
    %v659 = vpop.permute.xlu0 %658
    %v662 = vsel %vm157, %v657, 0.0
    %663 = vadd.xlane.f32.xlu0 %v662
    %v664 = vpop.xlane.xlu0 %663
    %v665 = vsel %vm157, %v659, 0.0
    %666 = vadd.xlane.f32.xlu0 %v665
    %v667 = vpop.xlane.xlu0 %666
    %v668 = vmax.f32 %v628, %v640
    %v669 = vmax.f32 %v631, %v643
    %v670 = vmax.f32 %v668, %v652
    %v671 = vmax.f32 %v669, %v655
    %v672 = vmax.f32 %v670, %v664
    %v673 = vmax.f32 %v671, %v667
    %v674 = vsub.f32 %v628, %v672
    %v675 = vsub.f32 %v631, %v673
    %v676 = vmul.f32 %v674, 1.442695
    %v677 = vpow.pop %v676
    %v678 = vmul.f32 %v675, 1.442695
    %v679 = vpow.pop %v678
    %v680 = vsub.f32 %v640, %v672
    %v681 = vsub.f32 %v643, %v673
    %v682 = vmul.f32 %v680, 1.442695
    %v683 = vpow.pop %v682
    %v684 = vmul.f32 %v681, 1.442695
    %v685 = vpow.pop %v684
    %v686 = vsub.f32 %v652, %v672
    %v687 = vsub.f32 %v655, %v673
    %v688 = vmul.f32 %v686, 1.442695
    %v689 = vpow.pop %v688
    %v690 = vmul.f32 %v687, 1.442695
    %v691 = vpow.pop %v690
    %v692 = vsub.f32 %v664, %v672
    %v693 = vsub.f32 %v667, %v673
    %v694 = vmul.f32 %v692, 1.442695
    %v695 = vpow.pop %v694
    %v696 = vmul.f32 %v693, 1.442695
    %v697 = vpow.pop %v696
    %v698 = vadd.f32 %v677, %v683
    %v699 = vadd.f32 %v679, %v685
    %v700 = vadd.f32 %v698, %v689
    %v701 = vadd.f32 %v699, %v691
    %v702 = vadd.f32 %v700, %v695
    %v703 = vadd.f32 %v701, %v697
    %v704 = vrcp.pop %v702
    %v705 = vrcp.pop %v703
    %v706 = vmul.f32 %v677, %v704
    %v707 = vmul.f32 %v679, %v705
    %v708 = vmul.f32 %v706, %v139
    %v709 = vmul.f32 %v707, %v144
    %v710 = vmul.f32 %v683, %v704
    %v711 = vmul.f32 %v685, %v705
    %v712 = vmul.f32 %v710, %v139
    %v713 = vmul.f32 %v711, %v144
    %716 = vrot.lane.b32.xlu0 %v712, 120
    %v717 = vpop.permute.xlu0 %716
    %718 = vrot.lane.b32.xlu0 %v713, 120
    %v719 = vpop.permute.xlu0 %718
    %v722 = vadd.f32 %v708, %v717
    %v723 = vadd.f32 %v709, %v719
    %v724 = vmul.f32 %v689, %v704
    %v725 = vmul.f32 %v691, %v705
    %v726 = vmul.f32 %v724, %v139
    %v727 = vmul.f32 %v725, %v144
    %730 = vrot.lane.b32.xlu0 %v726, 112
    %v731 = vpop.permute.xlu0 %730
    %732 = vrot.lane.b32.xlu0 %v727, 112
    %v733 = vpop.permute.xlu0 %732
    %v736 = vadd.f32 %v722, %v731
    %v737 = vadd.f32 %v723, %v733
    %v738 = vmul.f32 %v695, %v704
    %v739 = vmul.f32 %v697, %v705
    %v740 = vmul.f32 %v738, %v139
    %v741 = vmul.f32 %v739, %v144
    %744 = vrot.lane.b32.xlu0 %v740, 104
    %v745 = vpop.permute.xlu0 %744
    %746 = vrot.lane.b32.xlu0 %v741, 104
    %v747 = vpop.permute.xlu0 %746
    %v750 = vadd.f32 %v736, %v745
    %v751 = vadd.f32 %v737, %v747
    %v752 = vld [vmem:[#allocation7 + $0x10] sm:$0xff]
    %755 = vrot.lane.b32.xlu0 %v750, 64
    %v756 = vpop.permute.xlu0 %755
    %757 = vrot.lane.b32.xlu0 %v751, 64
    %v758 = vpop.permute.xlu0 %757
    %v759 = vsel %vm157, %v756, 0
    %v761 = vsel %vm157, %v758, 0
    %763 = vmatprep.subr.mxu0 0.0
    %764 = vmatpush1.msra.mxu0 %v752
    %765 = vmatprep.subr.mxu0 0.0
    %766 = vmatpush1.msra.mxu0 0.0
    %767 = vmatprep.subr.mxu0 0.0
    %768 = vmatpush1.msra.mxu0 0.0
    %769 = vmatprep.subr.mxu0 0.0
    %770 = vmatpush1.msra.mxu0 0.0
    %771 = vmatprep.subr.mxu0 0.0
    %772 = vmatpush1.msra.mxu0 0.0
    %773 = vmatprep.subr.mxu0 0.0
    %774 = vmatpush1.msra.mxu0 0.0
    %775 = vmatprep.subr.mxu0 0.0
    %776 = vmatpush1.msra.mxu0 0.0
    %777 = vmatprep.subr.mxu0 0.0
    %778 = vmatpush1.msra.mxu0 0.0
    %779 = vmatprep.subr.mxu0 0.0
    %780 = vmatpush1.msra.mxu0 0.0
    %781 = vmatprep.subr.mxu0 0.0
    %782 = vmatpush1.msra.mxu0 0.0
    %783 = vmatprep.subr.mxu0 0.0
    %784 = vmatpush1.msra.mxu0 0.0
    %785 = vmatprep.subr.mxu0 0.0
    %786 = vmatpush1.msra.mxu0 0.0
    %787 = vmatprep.subr.mxu0 0.0
    %788 = vmatpush1.msra.mxu0 0.0
    %789 = vmatprep.subr.mxu0 0.0
    %790 = vmatpush1.msra.mxu0 0.0
    %791 = vmatprep.subr.mxu0 0.0
    %792 = vmatpush1.msra.mxu0 0.0
    %793 = vmatprep.subr.mxu0 0.0
    %794 = vmatpush1.msra.mxu0 0.0
    %795 = vmatprep.subr.mxu0 0.0
    %796 = vmatpush1.msra.mxu0 0.0
    %797 = vmatprep.subr.mxu0 0.0
    %798 = vmatpush1.msra.mxu0 0.0
    %799 = vmatprep.subr.mxu0 0.0
    %800 = vmatpush1.msra.mxu0 0.0
    %801 = vmatprep.subr.mxu0 0.0
    %802 = vmatpush1.msra.mxu0 0.0
    %803 = vmatprep.subr.mxu0 0.0
    %804 = vmatpush1.msra.mxu0 0.0
    %805 = vmatprep.subr.mxu0 0.0
    %806 = vmatpush1.msra.mxu0 0.0
    %807 = vmatprep.subr.mxu0 0.0
    %808 = vmatpush1.msra.mxu0 0.0
    %809 = vmatprep.subr.mxu0 0.0
    %810 = vmatpush1.msra.mxu0 0.0
    %811 = vmatprep.subr.mxu0 0.0
    %812 = vmatpush1.msra.mxu0 0.0
    %813 = vmatprep.subr.mxu0 0.0
    %814 = vmatpush1.msra.mxu0 0.0
    %815 = vmatprep.subr.mxu0 0.0
    %816 = vmatpush1.msra.mxu0 0.0
    %817 = vmatprep.subr.mxu0 0.0
    %818 = vmatpush1.msra.mxu0 0.0
    %819 = vmatprep.subr.mxu0 0.0
    %820 = vmatpush1.msra.mxu0 0.0
    %821 = vmatprep.subr.mxu0 0.0
    %822 = vmatpush1.msra.mxu0 0.0
    %823 = vmatprep.subr.mxu0 0.0
    %824 = vmatpush1.msra.mxu0 0.0
    %825 = vmatprep.subr.mxu0 0.0
    %826 = vmatpush1.msra.mxu0 0.0
    %827 = vmatprep.mubr.f32.mxu0 0.0
    %828 = vmatmul.mubr.f32.gmra.mrb[0].mxu0 %v759
    %v829 = vpop.f32.mrb[0].mxu0
    %v830 = vadd.f32 0.0, %v829
    %v831 = vpop.f32.mrb[0].mxu0
    %832 = vmatprep.mubr.f32.mxu0 0.0
    %833 = vmatmul.mubr.f32.gmra.mrb[0].mxu0 %v761
    %v834 = vpop.f32.mrb[0].mxu0
    %v835 = vadd.f32 0.0, %v834
    %v836 = vpop.f32.mrb[0].mxu0
    %837 = vdwg.mxu0
    %v838 = vadd.f32 %v602, %v830
    %v839 = vadd.f32 %v607, %v835
    %840 = vrot.lane.b32.xlu0 %v139, 120
    %v841 = vpop.permute.xlu0 %840
    %842 = vrot.lane.b32.xlu0 %v144, 120
    %v843 = vpop.permute.xlu0 %842
    %v846 = vmul.f32 %v139, %v841
    %v847 = vmul.f32 %v144, %v843
    %850 = vrot.lane.b32.xlu0 %v846, 104
    %v851 = vpop.permute.xlu0 %850
    %852 = vrot.lane.b32.xlu0 %v847, 104
    %v853 = vpop.permute.xlu0 %852
    %v856 = vsel %vm157, %v851, 0.0
    %857 = vadd.xlane.f32.xlu0 %v856
    %v858 = vpop.xlane.xlu0 %857
    %v859 = vsel %vm157, %v853, 0.0
    %860 = vadd.xlane.f32.xlu0 %v859
    %v861 = vpop.xlane.xlu0 %860
    %862 = vrot.lane.b32.xlu0 %v616, 104
    %v863 = vpop.permute.xlu0 %862
    %864 = vrot.lane.b32.xlu0 %v617, 104
    %v865 = vpop.permute.xlu0 %864
    %v868 = vsel %vm157, %v863, 0.0
    %869 = vadd.xlane.f32.xlu0 %v868
    %v870 = vpop.xlane.xlu0 %869
    %v871 = vsel %vm157, %v865, 0.0
    %872 = vadd.xlane.f32.xlu0 %v871
    %v873 = vpop.xlane.xlu0 %872
    %874 = vrot.lane.b32.xlu0 %v297, 104
    %v875 = vpop.permute.xlu0 %874
    %876 = vrot.lane.b32.xlu0 %v298, 104
    %v877 = vpop.permute.xlu0 %876
    %v880 = vsel %vm157, %v875, 0.0
    %881 = vadd.xlane.f32.xlu0 %v880
    %v882 = vpop.xlane.xlu0 %881
    %v883 = vsel %vm157, %v877, 0.0
    %884 = vadd.xlane.f32.xlu0 %v883
    %v885 = vpop.xlane.xlu0 %884
    %886 = vrot.lane.b32.xlu0 %v155, 104
    %v887 = vpop.permute.xlu0 %886
    %888 = vrot.lane.b32.xlu0 %v156, 104
    %v889 = vpop.permute.xlu0 %888
    %v892 = vsel %vm157, %v887, 0.0
    %893 = vadd.xlane.f32.xlu0 %v892
    %v894 = vpop.xlane.xlu0 %893
    %v895 = vsel %vm157, %v889, 0.0
    %896 = vadd.xlane.f32.xlu0 %v895
    %v897 = vpop.xlane.xlu0 %896
    %v898 = vmax.f32 %v858, %v870
    %v899 = vmax.f32 %v861, %v873
    %v900 = vmax.f32 %v898, %v882
    %v901 = vmax.f32 %v899, %v885
    %v902 = vmax.f32 %v900, %v894
    %v903 = vmax.f32 %v901, %v897
    %v904 = vsub.f32 %v858, %v902
    %v905 = vsub.f32 %v861, %v903
    %v906 = vmul.f32 %v904, 1.442695
    %v907 = vpow.pop %v906
    %v908 = vmul.f32 %v905, 1.442695
    %v909 = vpow.pop %v908
    %v910 = vsub.f32 %v870, %v902
    %v911 = vsub.f32 %v873, %v903
    %v912 = vmul.f32 %v910, 1.442695
    %v913 = vpow.pop %v912
    %v914 = vmul.f32 %v911, 1.442695
    %v915 = vpow.pop %v914
    %v916 = vsub.f32 %v882, %v902
    %v917 = vsub.f32 %v885, %v903
    %v918 = vmul.f32 %v916, 1.442695
    %v919 = vpow.pop %v918
    %v920 = vmul.f32 %v917, 1.442695
    %v921 = vpow.pop %v920
    %v922 = vsub.f32 %v894, %v902
    %v923 = vsub.f32 %v897, %v903
    %v924 = vmul.f32 %v922, 1.442695
    %v925 = vpow.pop %v924
    %v926 = vmul.f32 %v923, 1.442695
    %v927 = vpow.pop %v926
    %v928 = vadd.f32 %v907, %v913
    %v929 = vadd.f32 %v909, %v915
    %v930 = vadd.f32 %v928, %v919
    %v931 = vadd.f32 %v929, %v921
    %v932 = vadd.f32 %v930, %v925
    %v933 = vadd.f32 %v931, %v927
    %v934 = vrcp.pop %v932
    %v935 = vrcp.pop %v933
    %v936 = vmul.f32 %v907, %v934
    %v937 = vmul.f32 %v909, %v935
    %v938 = vmul.f32 %v936, %v139
    %v939 = vmul.f32 %v937, %v144
    %v940 = vmul.f32 %v913, %v934
    %v941 = vmul.f32 %v915, %v935
    %v942 = vmul.f32 %v940, %v139
    %v943 = vmul.f32 %v941, %v144
    %946 = vrot.lane.b32.xlu0 %v942, 120
    %v947 = vpop.permute.xlu0 %946
    %948 = vrot.lane.b32.xlu0 %v943, 120
    %v949 = vpop.permute.xlu0 %948
    %v952 = vadd.f32 %v938, %v947
    %v953 = vadd.f32 %v939, %v949
    %v954 = vmul.f32 %v919, %v934
    %v955 = vmul.f32 %v921, %v935
    %v956 = vmul.f32 %v954, %v139
    %v957 = vmul.f32 %v955, %v144
    %960 = vrot.lane.b32.xlu0 %v956, 112
    %v961 = vpop.permute.xlu0 %960
    %962 = vrot.lane.b32.xlu0 %v957, 112
    %v963 = vpop.permute.xlu0 %962
    %v966 = vadd.f32 %v952, %v961
    %v967 = vadd.f32 %v953, %v963
    %v968 = vmul.f32 %v925, %v934
    %v969 = vmul.f32 %v927, %v935
    %v970 = vmul.f32 %v968, %v139
    %v971 = vmul.f32 %v969, %v144
    %974 = vrot.lane.b32.xlu0 %v970, 104
    %v975 = vpop.permute.xlu0 %974
    %976 = vrot.lane.b32.xlu0 %v971, 104
    %v977 = vpop.permute.xlu0 %976
    %v980 = vadd.f32 %v966, %v975
    %v981 = vadd.f32 %v967, %v977
    %v982 = vld [vmem:[#allocation7 + $0x18] sm:$0xff]
    %985 = vrot.lane.b32.xlu0 %v980, 64
    %v986 = vpop.permute.xlu0 %985
    %987 = vrot.lane.b32.xlu0 %v981, 64
    %v988 = vpop.permute.xlu0 %987
    %v989 = vsel %vm157, %v986, 0
    %v991 = vsel %vm157, %v988, 0
    %993 = vmatprep.subr.mxu0 0.0
    %994 = vmatpush1.msra.mxu0 %v982
    %995 = vmatprep.subr.mxu0 0.0
    %996 = vmatpush1.msra.mxu0 0.0
    %997 = vmatprep.subr.mxu0 0.0
    %998 = vmatpush1.msra.mxu0 0.0
    %999 = vmatprep.subr.mxu0 0.0
    %1000 = vmatpush1.msra.mxu0 0.0
    %1001 = vmatprep.subr.mxu0 0.0
    %1002 = vmatpush1.msra.mxu0 0.0
    %1003 = vmatprep.subr.mxu0 0.0
    %1004 = vmatpush1.msra.mxu0 0.0
    %1005 = vmatprep.subr.mxu0 0.0
    %1006 = vmatpush1.msra.mxu0 0.0
    %1007 = vmatprep.subr.mxu0 0.0
    %1008 = vmatpush1.msra.mxu0 0.0
    %1009 = vmatprep.subr.mxu0 0.0
    %1010 = vmatpush1.msra.mxu0 0.0
    %1011 = vmatprep.subr.mxu0 0.0
    %1012 = vmatpush1.msra.mxu0 0.0
    %1013 = vmatprep.subr.mxu0 0.0
    %1014 = vmatpush1.msra.mxu0 0.0
    %1015 = vmatprep.subr.mxu0 0.0
    %1016 = vmatpush1.msra.mxu0 0.0
    %1017 = vmatprep.subr.mxu0 0.0
    %1018 = vmatpush1.msra.mxu0 0.0
    %1019 = vmatprep.subr.mxu0 0.0
    %1020 = vmatpush1.msra.mxu0 0.0
    %1021 = vmatprep.subr.mxu0 0.0
    %1022 = vmatpush1.msra.mxu0 0.0
    %1023 = vmatprep.subr.mxu0 0.0
    %1024 = vmatpush1.msra.mxu0 0.0
    %1025 = vmatprep.subr.mxu0 0.0
    %1026 = vmatpush1.msra.mxu0 0.0
    %1027 = vmatprep.subr.mxu0 0.0
    %1028 = vmatpush1.msra.mxu0 0.0
    %1029 = vmatprep.subr.mxu0 0.0
    %1030 = vmatpush1.msra.mxu0 0.0
    %1031 = vmatprep.subr.mxu0 0.0
    %1032 = vmatpush1.msra.mxu0 0.0
    %1033 = vmatprep.subr.mxu0 0.0
    %1034 = vmatpush1.msra.mxu0 0.0
    %1035 = vmatprep.subr.mxu0 0.0
    %1036 = vmatpush1.msra.mxu0 0.0
    %1037 = vmatprep.subr.mxu0 0.0
    %1038 = vmatpush1.msra.mxu0 0.0
    %1039 = vmatprep.subr.mxu0 0.0
    %1040 = vmatpush1.msra.mxu0 0.0
    %1041 = vmatprep.subr.mxu0 0.0
    %1042 = vmatpush1.msra.mxu0 0.0
    %1043 = vmatprep.subr.mxu0 0.0
    %1044 = vmatpush1.msra.mxu0 0.0
    %1045 = vmatprep.subr.mxu0 0.0
    %1046 = vmatpush1.msra.mxu0 0.0
    %1047 = vmatprep.subr.mxu0 0.0
    %1048 = vmatpush1.msra.mxu0 0.0
    %1049 = vmatprep.subr.mxu0 0.0
    %1050 = vmatpush1.msra.mxu0 0.0
    %1051 = vmatprep.subr.mxu0 0.0
    %1052 = vmatpush1.msra.mxu0 0.0
    %1053 = vmatprep.subr.mxu0 0.0
    %1054 = vmatpush1.msra.mxu0 0.0
    %1055 = vmatprep.subr.mxu0 0.0
    %1056 = vmatpush1.msra.mxu0 0.0
    %1057 = vmatprep.mubr.f32.mxu0 0.0
    %1058 = vmatmul.mubr.f32.gmra.mrb[0].mxu0 %v989
    %v1059 = vpop.f32.mrb[0].mxu0
    %v1060 = vadd.f32 0.0, %v1059
    %v1061 = vpop.f32.mrb[0].mxu0
    %1062 = vmatprep.mubr.f32.mxu0 0.0
    %1063 = vmatmul.mubr.f32.gmra.mrb[0].mxu0 %v991
    %v1064 = vpop.f32.mrb[0].mxu0
    %v1065 = vadd.f32 0.0, %v1064
    %v1066 = vpop.f32.mrb[0].mxu0
    %1067 = vdwg.mxu0
    %v1068 = vadd.f32 %v838, %v1060
    %v1069 = vadd.f32 %v839, %v1065
    %v1070 = vld [vmem:[%s3] sm:$0x1]
    %v1072 = vlaneseq
    %v1073 = vshrl.u32 %v1072, 7
    %v1074 = vsub.s32 0, %v1073
    %v1075 = vrot.slane %v1070, %v1074
    %v1077 = vadd.f32 %v1068, %v1075
    %v1078 = vadd.f32 %v1069, %v1075
    %1079 = vst.msk [vmem:[#allocation8] sm:$0xff] %vm65, %v1077
    %1080 = vst.msk [vmem:[#allocation8 + $0x8] sm:$0xff] %vm65, %v1078
    // Predicated region
    $region30: #{tpu_custom_call.1} parent=1 // pred_check
      _
    $region31: #{tpu_custom_call.1} parent=1 // pred_check_branch
      %1082 = sbr.rel (0) target = $region33
    $region32: #{tpu_custom_call.1} parent=1 // pred_region
      %s1084 = ssub.s32 256, 256
      %1085 = vsyncadd [#allocation4], %s1084
      %s1086 = sshll.u32 [#allocation8], 4
      %s1087 = int_to_ptr.vmem [resolvable:$true] %s1086
      %1092 = dma.vmem_to_hbm [thread:$0]  %s1087, 256, %s4, [#allocation4], 128, 128, 8
    $region33: #{tpu_custom_call.1} parent=1 // pred_fallthru
      _
    // Predicated region
    $region34: #{tpu_custom_call.1} parent=1 // pred_check
      _
    $region35: #{tpu_custom_call.1} parent=1 // pred_check_branch
      %1094 = sbr.rel (0) target = $region37
    $region36: #{tpu_custom_call.1} parent=1 // pred_region
      %1095 = dma.done [#allocation4], 256
    $region37: #{tpu_custom_call.1} parent=1 // pred_fallthru
      _
    %1096 = vsyncpa [#allocation3], 1
    %1097 = vsyncpa [#allocation6], 1
    %1098 = vsyncpa [#allocation4], 1

</llo_original>
